<compile_context>
chip_gen: v6e
topology: v6e:2x2x1
jax: 0.10.0
libtpu: 0.0.40
codegen_flags: <defaults>
</compile_context>

<pallas_src>
import functools

import jax
import jax.numpy as jnp
from jax import lax  # noqa: F401  (kept for clarity; jnp.dot lowers the same)
from jax.experimental import pallas as pl
from jax.experimental.pallas import tpu as pltpu


def _round_up(x, m):
    return ((x + m - 1) // m) * m


def _vmem_capacity_bytes():
    try:
        return int(pltpu.get_tpu_info().vmem_capacity_bytes)
    except Exception:
        return 64 * 2**20  # conservative fallback (v7x per-TC VMEM)


# ---------------------------------------------------------------------------
# 1. Encoder final LayerNorm (torch semantics: unbiased std, / (std + eps))
# ---------------------------------------------------------------------------
def _layernorm_kernel(x_ref, g_ref, b_ref, o_ref, *, d, eps):
    x = x_ref[...].astype(jnp.float32)
    mean = jnp.mean(x, axis=-1, keepdims=True)
    xc = x - mean
    var = jnp.sum(xc * xc, axis=-1, keepdims=True) / max(d - 1, 1)  # unbiased
    y = g_ref[...] * (xc / (jnp.sqrt(var) + eps)) + b_ref[...]
    o_ref[...] = y.astype(o_ref.dtype)


def layer_norm(x, a_2, b_2, *, eps=1e-6, tm=256):
    """a_2 * (x - mean) / (std + eps) + b_2 over the last axis (torch std)."""
    orig_shape = x.shape
    d = orig_shape[-1]
    x2d = x.reshape(-1, d)
    M = x2d.shape[0]

    tm = max(8, (min(tm, _round_up(M, 8)) // 8) * 8)
    m_pad = _round_up(M, tm)
    if m_pad != M:
        x2d = jnp.pad(x2d, ((0, m_pad - M), (0, 0)))

    g2d = a_2.astype(jnp.float32).reshape(1, d)
    b2d = b_2.astype(jnp.float32).reshape(1, d)

    out2d = pl.pallas_call(
        functools.partial(_layernorm_kernel, d=d, eps=eps),
        out_shape=jax.ShapeDtypeStruct((m_pad, d), x.dtype),
        grid_spec=pltpu.PrefetchScalarGridSpec(
            num_scalar_prefetch=0,
            grid=(m_pad // tm,),
            in_specs=[
                pl.BlockSpec((tm, d), lambda i: (i, 0)),   # rows of x
                pl.BlockSpec((1, d), lambda i: (0, 0)),    # a_2
                pl.BlockSpec((1, d), lambda i: (0, 0)),    # b_2
            ],
            out_specs=pl.BlockSpec((tm, d), lambda i: (i, 0)),
        ),
        compiler_params=pltpu.CompilerParams(
            dimension_semantics=("parallel",)),
    )(x2d, g2d, b2d)

    return out2d[:M].reshape(orig_shape)


def encoder_forward(fc_feats, att, word_feats, attr_feats, boxes_feats, mask,
                    a_2, b_2, *, num_layers=3, eps=1e-6):
    """Encoder.forward: N encoder layers followed by the final LayerNorm."""
    # TODO(synk): the EncoderLayer class is injected into Encoder(...) and is
    # not defined in the provided spec; each of the N layers is therefore an
    # identity pass-through here, and only the final LayerNorm is lowered.
    del fc_feats, word_feats, attr_feats, boxes_feats, mask
    x = att
    for _ in range(num_layers):
        x = x
    return layer_norm(x, a_2, b_2, eps=eps)


# ---------------------------------------------------------------------------
# 2. Projection + log_softmax head (previously reviewed kernel, upgraded)
# ---------------------------------------------------------------------------
def _logits_lse_kernel(x_ref, wt_ref, b_ref, logit_ref, lse_ref, m_ref, l_ref):
    """Grid = (row_tile i [parallel], vocab_tile j [arbitrary]).

    x_ref  : (tm, d)    bf16  auto-pipelined
    wt_ref : (d, tn)    bf16  auto-pipelined (weight streamed tile-by-tile,
                              prefetch across row-tile boundaries is automatic)
    b_ref  : (1, tn)    f32
    logit_ref: (tm, tn) f32   streamed to HBM every step (lane-dense)
    lse_ref : (tm, 1)   f32   resident across j, written at the last j
    m_ref/l_ref : (tm, 1) f32 VMEM scratch: running max / running sum
    """
    j = pl.program_id(1)

    @pl.when(j == 0)
    def _():
        m_ref[...] = jnp.full_like(m_ref, -jnp.inf)
        l_ref[...] = jnp.zeros_like(l_ref)

    # (tm, d) x (d, tn): bf16 operands, f32 accumulation on the MXU.
    logits = jnp.dot(x_ref[...], wt_ref[...],
                     preferred_element_type=jnp.float32) + b_ref[...]

    # Online logsumexp across the vocab grid axis (all f32).
    m_prev = m_ref[...]
    m_new = jnp.maximum(m_prev, jnp.max(logits, axis=-1, keepdims=True))
    l_ref[...] = (l_ref[...] * jnp.exp(m_prev - m_new)
                  + jnp.sum(jnp.exp(logits - m_new), axis=-1, keepdims=True))
    m_ref[...] = m_new

    # Raw f32 logits streamed straight to HBM (no bf16 double-rounding).
    logit_ref[...] = logits

    @pl.when(j == pl.num_programs(1) - 1)
    def _():
        lse_ref[...] = m_ref[...] + jnp.log(l_ref[...])


def _normalize_kernel(logit_ref, lse_ref, o_ref):
    # log_softmax = logits - logsumexp  (cheap elementwise epilogue)
    o_ref[...] = (logit_ref[...] - lse_ref[...]).astype(o_ref.dtype)


def generator_forward(x, weight, bias, *, tm=512, tn=512,
                      out_dtype=jnp.float32):
    """log_softmax(x @ weight.T + bias, axis=-1).

    x: (batch, seq, d_model); weight: (vocab, d_model); bias: (vocab,).
    Returns (batch, seq, vocab) log-probabilities in `out_dtype`.
    """
    batch, seq, d_model = x.shape
    vocab = weight.shape[0]
    M = batch * seq

    # ---- tiling / padding (no divisibility requirements) ------------------
    tm = max(8, (tm // 8) * 8)
    tn = max(128, (tn // 128) * 128)
    tm_eff = min(tm, _round_up(M, 8))
    tn_eff = min(tn, _round_up(vocab, 128))
    m_pad = _round_up(M, tm_eff)
    v_pad = _round_up(vocab, tn_eff)

    # ---- operand prep ------------------------------------------------------
    # TODO(synk): in production store the projection weight pre-transposed as
    # (d_model, vocab) in bf16 so these one-off per-call copies vanish
    # (review item 8); kept here so the wrapper accepts the PyTorch layout.
    x2d = x.reshape(M, d_model).astype(jnp.bfloat16)
    if m_pad != M:
        x2d = jnp.pad(x2d, ((0, m_pad - M), (0, 0)))
    wt = weight.astype(jnp.bfloat16).T                   # (d_model, vocab)
    b = bias.astype(jnp.float32)
    if v_pad != vocab:
        # Padded vocab columns get a huge negative bias so exp() underflows to
        # zero in the logsumexp; they are sliced off after the call.
        wt = jnp.pad(wt, ((0, 0), (0, v_pad - vocab)))
        b = jnp.pad(b, (0, v_pad - vocab), constant_values=-1e30)
    b2d = b.reshape(1, v_pad)

    # ---- VMEM budget: actual tile footprint vs. per-generation capacity ----
    needed = (2 * tm_eff * d_model * 2        # x blocks (bf16, double-buffered)
              + 2 * d_model * tn_eff * 2      # weight blocks (bf16)
              + 2 * tn_eff * 4                # bias blocks
              + 2 * tm_eff * tn_eff * 4       # streamed f32 logits blocks
              + 2 * tm_eff * 4                # lse blocks
              + 2 * tm_eff * 4 * 2)           # m/l scratch
    cap = _vmem_capacity_bytes()
    vmem_limit = int(min(0.85 * cap, max(4 * needed, 64 * 2**20)))
    vmem_limit = int(max(vmem_limit, 2 * needed))

    grid = (m_pad // tm_eff, v_pad // tn_eff)
    cost = pl.CostEstimate(
        flops=2 * m_pad * v_pad * d_model,
        transcendentals=m_pad * v_pad,
        bytes_accessed=(grid[0] * v_pad * d_model * 2    # weight re-streams
                        + m_pad * d_model * 2            # x
                        + m_pad * v_pad * 4))            # logits writeback

    logits, lse = pl.pallas_call(
        _logits_lse_kernel,
        out_shape=(jax.ShapeDtypeStruct((m_pad, v_pad), jnp.float32),
                   jax.ShapeDtypeStruct((m_pad, 1), jnp.float32)),
        grid_spec=pltpu.PrefetchScalarGridSpec(
            num_scalar_prefetch=0,
            grid=grid,
            in_specs=[
                pl.BlockSpec((tm_eff, d_model), lambda i, j: (i, 0)),  # x
                pl.BlockSpec((d_model, tn_eff), lambda i, j: (0, j)),  # weight
                pl.BlockSpec((1, tn_eff), lambda i, j: (0, j)),        # bias
            ],
            out_specs=[
                pl.BlockSpec((tm_eff, tn_eff), lambda i, j: (i, j)),   # logits
                pl.BlockSpec((tm_eff, 1), lambda i, j: (i, 0)),        # lse
            ],
            scratch_shapes=[
                pltpu.VMEM((tm_eff, 1), jnp.float32),   # running max
                pltpu.VMEM((tm_eff, 1), jnp.float32),   # running sum
            ],
        ),
        compiler_params=pltpu.CompilerParams(
            dimension_semantics=("parallel", "arbitrary"),
            vmem_limit_bytes=vmem_limit,
        ),
        cost_estimate=cost,
    )(x2d, wt, b2d)

    # Elementwise epilogue: log_softmax = logits - lse (lane-dense stores).
    out2d = pl.pallas_call(
        _normalize_kernel,
        out_shape=jax.ShapeDtypeStruct((m_pad, v_pad), out_dtype),
        grid_spec=pltpu.PrefetchScalarGridSpec(
            num_scalar_prefetch=0,
            grid=grid,
            in_specs=[
                pl.BlockSpec((tm_eff, tn_eff), lambda i, j: (i, j)),
                pl.BlockSpec((tm_eff, 1), lambda i, j: (i, 0)),
            ],
            out_specs=pl.BlockSpec((tm_eff, tn_eff), lambda i, j: (i, j)),
        ),
        compiler_params=pltpu.CompilerParams(
            dimension_semantics=("parallel", "parallel"),
            vmem_limit_bytes=vmem_limit,
        ),
    )(logits, lse)

    return out2d[:M, :vocab].reshape(batch, seq, vocab)


# ---------------------------------------------------------------------------
if __name__ == "__main__":
    key = jax.random.PRNGKey(0)
    keys = jax.random.split(key, 10)

    # ---- Encoder (the spec): N (identity) layers + final LayerNorm --------
    batch, n_att, d_model, num_layers = 2, 16, 32, 3
    fc_feats = jax.random.normal(keys[0], (batch, d_model), dtype=jnp.float32)
    att = jax.random.normal(keys[1], (batch, n_att, d_model), dtype=jnp.float32)
    word_feats = jax.random.normal(keys[2], (batch, 8, d_model), dtype=jnp.float32)
    attr_feats = jax.random.normal(keys[3], (batch, 8, d_model), dtype=jnp.float32)
    boxes_feats = jax.random.normal(keys[4], (batch, n_att, 4), dtype=jnp.float32)
    mask = jnp.ones((batch, 1, n_att), dtype=jnp.float32)
    a_2 = 1.0 + 0.05 * jax.random.normal(keys[5], (d_model,), dtype=jnp.float32)
    b_2 = 0.05 * jax.random.normal(keys[6], (d_model,), dtype=jnp.float32)

    enc_out = encoder_forward(fc_feats, att, word_feats, attr_feats,
                              boxes_feats, mask, a_2, b_2,
                              num_layers=num_layers)
    enc_out = jax.block_until_ready(enc_out)
    assert enc_out.shape == att.shape

    mean = jnp.mean(att, axis=-1, keepdims=True)
    var = jnp.sum((att - mean) ** 2, axis=-1, keepdims=True) / (d_model - 1)
    enc_ref = a_2 * (att - mean) / (jnp.sqrt(var) + 1e-6) + b_2
    enc_err = float(jnp.max(jnp.abs(enc_out - enc_ref)))
    assert enc_err < 2e-4, f"LayerNorm max abs error {enc_err}"

    # ---- projection + log_softmax head (reviewed kernel, upgraded) --------
    # seq=9 / vocab=1000 exercise both the row-padding and the multi-tile
    # online-logsumexp / vocab-padding paths.
    seq, vocab = 9, 1000
    hx = jax.random.normal(keys[7], (batch, seq, d_model), dtype=jnp.float32)
    w = jax.random.normal(keys[8], (vocab, d_model),
                          dtype=jnp.float32) / jnp.sqrt(d_model)
    bias = 0.01 * jax.random.normal(keys[9], (vocab,), dtype=jnp.float32)

    logp = generator_forward(hx, w, bias)
    logp = jax.block_until_ready(logp)
    assert logp.shape == (batch, seq, vocab)

    head_ref = jax.nn.log_softmax(
        jnp.einsum("bsd,vd->bsv", hx, w, precision="highest") + bias, axis=-1)
    head_err = float(jnp.max(jnp.abs(logp.astype(jnp.float32) - head_ref)))
    assert head_err < 1.5e-1, f"log_softmax head max abs error {head_err}"

    print("KERNEL_OK")
</pallas_src>

<mosaic_0001>
module attributes {stable_mosaic.version = 11 : i64} {
  func.func @_layernorm_kernel(%arg0: i32, %arg1: memref<32x32xf32, #tpu.memory_space<vmem>>, %arg2: memref<1x32xf32, #tpu.memory_space<vmem>>, %arg3: memref<1x32xf32, #tpu.memory_space<vmem>>, %arg4: memref<32x32xf32, #tpu.memory_space<vmem>>) attributes {dimension_semantics = [#tpu.dimension_semantics<parallel>], iteration_bounds = array<i64: 1>, scalar_prefetch = 0 : i64, scratch_operands = 0 : i64, tpu.core_type = #tpu.core_type<tc>, window_params = [{transform_indices = @transform_0, window_bounds = array<i64: 32, 32>}, {pipeline_mode = #tpu.pipeline_mode<synchronous>, transform_indices = @transform_1, window_bounds = array<i64: 1, 32>}, {pipeline_mode = #tpu.pipeline_mode<synchronous>, transform_indices = @transform_2, window_bounds = array<i64: 1, 32>}, {transform_indices = @transform_3, window_bounds = array<i64: 32, 32>}]} {
    %c0 = arith.constant 0 : index
    %c0_0 = arith.constant 0 : index
    %0 = vector.load %arg1[%c0, %c0_0] : memref<32x32xf32, #tpu.memory_space<vmem>>, vector<32x32xf32>
    %cst = arith.constant dense<0.000000e+00> : vector<32xf32>
    %1 = vector.multi_reduction <add>, %0, %cst [1] : vector<32x32xf32> to vector<32xf32>
    %2 = vector.shape_cast %1 : vector<32xf32> to vector<32x1xf32>
    %cst_1 = arith.constant 3.200000e+01 : f32
    %3 = vector.broadcast %cst_1 : f32 to vector<32x1xf32>
    %4 = arith.divf %2, %3 : vector<32x1xf32>
    %5 = vector.broadcast %4 : vector<32x1xf32> to vector<32x32xf32>
    %6 = arith.subf %0, %5 : vector<32x32xf32>
    %7 = arith.mulf %6, %6 : vector<32x32xf32>
    %cst_2 = arith.constant dense<0.000000e+00> : vector<32xf32>
    %8 = vector.multi_reduction <add>, %7, %cst_2 [1] : vector<32x32xf32> to vector<32xf32>
    %9 = vector.shape_cast %8 : vector<32xf32> to vector<32x1xf32>
    %cst_3 = arith.constant 3.100000e+01 : f32
    %10 = vector.broadcast %cst_3 : f32 to vector<32x1xf32>
    %11 = arith.divf %9, %10 : vector<32x1xf32>
    %c0_4 = arith.constant 0 : index
    %c0_5 = arith.constant 0 : index
    %12 = vector.load %arg2[%c0_4, %c0_5] : memref<1x32xf32, #tpu.memory_space<vmem>>, vector<1x32xf32>
    %13 = math.sqrt %11 : vector<32x1xf32>
    %cst_6 = arith.constant 9.99999997E-7 : f32
    %14 = vector.broadcast %cst_6 : f32 to vector<32x1xf32>
    %15 = arith.addf %13, %14 : vector<32x1xf32>
    %16 = vector.broadcast %15 : vector<32x1xf32> to vector<32x32xf32>
    %17 = arith.divf %6, %16 : vector<32x32xf32>
    %18 = vector.broadcast %12 : vector<1x32xf32> to vector<32x32xf32>
    %19 = arith.mulf %18, %17 : vector<32x32xf32>
    %c0_7 = arith.constant 0 : index
    %c0_8 = arith.constant 0 : index
    %20 = vector.load %arg3[%c0_7, %c0_8] : memref<1x32xf32, #tpu.memory_space<vmem>>, vector<1x32xf32>
    %21 = vector.broadcast %20 : vector<1x32xf32> to vector<32x32xf32>
    %22 = arith.addf %19, %21 : vector<32x32xf32>
    %c0_9 = arith.constant 0 : index
    %c0_10 = arith.constant 0 : index
    %23 = vector.load %arg4[%c0_9, %c0_10] : memref<32x32xf32, #tpu.memory_space<vmem>>, vector<32x32xf32>
    tpu.vector_store %arg4[%c0_9, %c0_10], %22 {strides = array<i32>} : memref<32x32xf32, #tpu.memory_space<vmem>>, vector<32x32xf32>,
    return
  }
  func.func @transform_0(%arg0: i32) -> (i32, i32) {
    %c0_i32 = arith.constant 0 : i32
    %c0_i32_0 = arith.constant 0 : i32
    return %arg0, %c0_i32 : i32, i32
  }
  func.func @transform_1(%arg0: i32) -> (i32, i32) {
    %c0_i32 = arith.constant 0 : i32
    %c0_i32_0 = arith.constant 0 : i32
    %c0_i32_1 = arith.constant 0 : i32
    return %c0_i32, %c0_i32_0 : i32, i32
  }
  func.func @transform_2(%arg0: i32) -> (i32, i32) {
    %c0_i32 = arith.constant 0 : i32
    %c0_i32_0 = arith.constant 0 : i32
    %c0_i32_1 = arith.constant 0 : i32
    return %c0_i32, %c0_i32_0 : i32, i32
  }
  func.func @transform_3(%arg0: i32) -> (i32, i32) {
    %c0_i32 = arith.constant 0 : i32
    %c0_i32_0 = arith.constant 0 : i32
    return %arg0, %c0_i32 : i32, i32
  }
}

</mosaic_0001>

<llo_original>
// kernel: tpu_custom_call.1
$region0: #{tpu_custom_call.1}
  #allocation0 [shape = 'u32[]', space=smem, size = 0x4, offset = 0x4, fixed_abs, tag = 'smem constant byte address 0x4 - core index']
  #allocation1 [shape = 'u32[144,128]{1,0:T(1,128)}', space=vmem, size = 0x12000, scoped, tag = 'internal scratch']
  %s0 = inlined_call_operand.hbm [shape: f32[32,32], index: 0, kind: input, shape index: {}]
  %s1 = inlined_call_operand.vmem [shape: f32[1,32], index: 1, kind: input, shape index: {}]
  %s2 = inlined_call_operand.vmem [shape: f32[1,32], index: 2, kind: input, shape index: {}]
  %s3 = inlined_call_operand.hbm [shape: f32[32,32], index: 3, kind: output, shape index: {}]
  %s4 = sld [smem:[#allocation0]]
  $region26: #{tpu_custom_call.1} parent=0
    _
  %s6 = ssub.s32 1, %s4
  %s7 = scalar_select 0, %s6, %s4
  $region1: #{tpu_custom_call.1} parent=0
    #allocation2 [shape = 'u8[16384]{0}', space=vmem, size = 0x4000, scoped, tag = 'input window, operand 0, single buffered']
    #allocation3 [shape = 's32[1]{0}', space=sflag, size = 0x4, scoped, tag = 'scoped memory for tpu_custom_call.1']
    #allocation4 [shape = 's32[1]{0}', space=sflag, size = 0x4, scoped, tag = 'scoped memory for tpu_custom_call.1']
    #allocation5 [shape = 'u8[16384]{0}', space=vmem, size = 0x4000, scoped, tag = 'output window, operand 0, single buffered']
    %8 = vsyncpa [#allocation3], 0
    %9 = vsyncpa [#allocation4], 0
    // Predicated region
    $region2: #{tpu_custom_call.1} parent=1 // pred_check
      _
    $region3: #{tpu_custom_call.1} parent=1 // pred_check_branch
      %11 = sbr.rel (0) target = $region5
    $region4: #{tpu_custom_call.1} parent=1 // pred_region
      %s13 = ssub.s32 512, 512
      %14 = vsyncadd [#allocation3], %s13
      %s15 = sshll.u32 [#allocation2], 4
      %s16 = int_to_ptr.vmem [resolvable:$true] %s15
      %21 = dma.hbm_to_vmem [thread:$0]  %s0, 512, %s16, [#allocation3], 128, 128, 8
    $region5: #{tpu_custom_call.1} parent=1 // pred_fallthru
      _
    // Predicated region
    $region6: #{tpu_custom_call.1} parent=1 // pred_check
      _
    $region7: #{tpu_custom_call.1} parent=1 // pred_check_branch
      %23 = sbr.rel (0) target = $region9
    $region8: #{tpu_custom_call.1} parent=1 // pred_region
      _
    $region9: #{tpu_custom_call.1} parent=1 // pred_fallthru
      _
    // Predicated region
    $region10: #{tpu_custom_call.1} parent=1 // pred_check
      _
    $region11: #{tpu_custom_call.1} parent=1 // pred_check_branch
      %25 = sbr.rel (0) target = $region13
    $region12: #{tpu_custom_call.1} parent=1 // pred_region
      _
    $region13: #{tpu_custom_call.1} parent=1 // pred_fallthru
      _
    // Predicated region
    $region14: #{tpu_custom_call.1} parent=1 // pred_check
      _
    $region15: #{tpu_custom_call.1} parent=1 // pred_check_branch
      %27 = sbr.rel (0) target = $region17
    $region16: #{tpu_custom_call.1} parent=1 // pred_region
      %28 = dma.done [#allocation3], 512
    $region17: #{tpu_custom_call.1} parent=1 // pred_fallthru
      _
    %v29 = vld [vmem:[#allocation2] sm:$0xff]
    %v30 = vld [vmem:[#allocation2 + $0x8] sm:$0xff]
    %v31 = vld [vmem:[#allocation2 + $0x10] sm:$0xff]
    %v32 = vld [vmem:[#allocation2 + $0x18] sm:$0xff]
    %vm33 = vcmask 261120
    %v34 = vsel %vm33, %v29, 0.0
    %35 = vadd.xlane.f32.xlu0 %v34
    %v36 = vpop.xlane.xlu0 %35
    %v37 = vsel %vm33, %v30, 0.0
    %38 = vadd.xlane.f32.xlu0 %v37
    %v39 = vpop.xlane.xlu0 %38
    %v40 = vsel %vm33, %v31, 0.0
    %41 = vadd.xlane.f32.xlu0 %v40
    %v42 = vpop.xlane.xlu0 %41
    %v43 = vsel %vm33, %v32, 0.0
    %44 = vadd.xlane.f32.xlu0 %v43
    %v45 = vpop.xlane.xlu0 %44
    %v46 = vrcp.pop 32.0
    %v47 = vmul.f32 %v36, %v46
    %v48 = vmul.f32 %v39, %v46
    %v49 = vmul.f32 %v42, %v46
    %v50 = vmul.f32 %v45, %v46
    %v51 = vsub.f32 %v29, %v47
    %v52 = vsub.f32 %v30, %v48
    %v53 = vsub.f32 %v31, %v49
    %v54 = vsub.f32 %v32, %v50
    %v55 = vmul.f32 %v51, %v51
    %v56 = vmul.f32 %v52, %v52
    %v57 = vmul.f32 %v53, %v53
    %v58 = vmul.f32 %v54, %v54
    %v59 = vsel %vm33, %v55, 0.0
    %60 = vadd.xlane.f32.xlu0 %v59
    %v61 = vpop.xlane.xlu0 %60
    %v62 = vsel %vm33, %v56, 0.0
    %63 = vadd.xlane.f32.xlu0 %v62
    %v64 = vpop.xlane.xlu0 %63
    %v65 = vsel %vm33, %v57, 0.0
    %66 = vadd.xlane.f32.xlu0 %v65
    %v67 = vpop.xlane.xlu0 %66
    %v68 = vsel %vm33, %v58, 0.0
    %69 = vadd.xlane.f32.xlu0 %v68
    %v70 = vpop.xlane.xlu0 %69
    %v71 = vrcp.pop 31.0
    %v72 = vmul.f32 %v61, %v71
    %v73 = vmul.f32 %v64, %v71
    %v74 = vmul.f32 %v67, %v71
    %v75 = vmul.f32 %v70, %v71
    %v76 = vld [vmem:[%s1] sm:$0x1]
    %v77 = vrsqrt.pop %v72
    %v78 = vmul.f32 %v72, %v77
    %vm79 = vcmp.eq.f32.partialorder %v72, inf
    %v80 = vsel %vm79, %v72, %v78
    %vm81 = vcmp.eq.f32.partialorder %v72, 0.0
    %v82 = vand.u32 %v72, 2147483648
    %v83 = vsel %vm81, %v82, %v80
    %v84 = vrsqrt.pop %v73
    %v85 = vmul.f32 %v73, %v84
    %vm86 = vcmp.eq.f32.partialorder %v73, inf
    %v87 = vsel %vm86, %v73, %v85
    %vm88 = vcmp.eq.f32.partialorder %v73, 0.0
    %v89 = vand.u32 %v73, 2147483648
    %v90 = vsel %vm88, %v89, %v87
    %v91 = vrsqrt.pop %v74
    %v92 = vmul.f32 %v74, %v91
    %vm93 = vcmp.eq.f32.partialorder %v74, inf
    %v94 = vsel %vm93, %v74, %v92
    %vm95 = vcmp.eq.f32.partialorder %v74, 0.0
    %v96 = vand.u32 %v74, 2147483648
    %v97 = vsel %vm95, %v96, %v94
    %v98 = vrsqrt.pop %v75
    %v99 = vmul.f32 %v75, %v98
    %vm100 = vcmp.eq.f32.partialorder %v75, inf
    %v101 = vsel %vm100, %v75, %v99
    %vm102 = vcmp.eq.f32.partialorder %v75, 0.0
    %v103 = vand.u32 %v75, 2147483648
    %v104 = vsel %vm102, %v103, %v101
    %v105 = vadd.f32 %v83, 1e-06
    %v106 = vadd.f32 %v90, 1e-06
    %v107 = vadd.f32 %v97, 1e-06
    %v108 = vadd.f32 %v104, 1e-06
    %v109 = vrcp.pop %v105
    %v110 = vmul.f32 %v51, %v109
    %v111 = vrcp.pop %v106
    %v112 = vmul.f32 %v52, %v111
    %v113 = vrcp.pop %v107
    %v114 = vmul.f32 %v53, %v113
    %v115 = vrcp.pop %v108
    %v116 = vmul.f32 %v54, %v115
    %v118 = vlaneseq
    %v119 = vshrl.u32 %v118, 7
    %v120 = vsub.s32 0, %v119
    %v121 = vrot.slane %v76, %v120
    %v123 = vmul.f32 %v121, %v110
    %v124 = vmul.f32 %v121, %v112
    %v125 = vmul.f32 %v121, %v114
    %v126 = vmul.f32 %v121, %v116
    %v127 = vld [vmem:[%s2] sm:$0x1]
    %v129 = vlaneseq
    %v130 = vshrl.u32 %v129, 7
    %v131 = vsub.s32 0, %v130
    %v132 = vrot.slane %v127, %v131
    %v134 = vadd.f32 %v123, %v132
    %v135 = vadd.f32 %v124, %v132
    %v136 = vadd.f32 %v125, %v132
    %v137 = vadd.f32 %v126, %v132
    %138 = vst.msk [vmem:[#allocation5] sm:$0xff] %vm33, %v134
    %139 = vst.msk [vmem:[#allocation5 + $0x8] sm:$0xff] %vm33, %v135
    %140 = vst.msk [vmem:[#allocation5 + $0x10] sm:$0xff] %vm33, %v136
    %141 = vst.msk [vmem:[#allocation5 + $0x18] sm:$0xff] %vm33, %v137
    // Predicated region
    $region18: #{tpu_custom_call.1} parent=1 // pred_check
      _
    $region19: #{tpu_custom_call.1} parent=1 // pred_check_branch
      %143 = sbr.rel (0) target = $region21
    $region20: #{tpu_custom_call.1} parent=1 // pred_region
      %s145 = ssub.s32 512, 512
      %146 = vsyncadd [#allocation4], %s145
      %s147 = sshll.u32 [#allocation5], 4
      %s148 = int_to_ptr.vmem [resolvable:$true] %s147
      %153 = dma.vmem_to_hbm [thread:$0]  %s148, 512, %s3, [#allocation4], 128, 128, 8
    $region21: #{tpu_custom_call.1} parent=1 // pred_fallthru
      _
    // Predicated region
    $region22: #{tpu_custom_call.1} parent=1 // pred_check
      _
    $region23: #{tpu_custom_call.1} parent=1 // pred_check_branch
      %155 = sbr.rel (0) target = $region25
    $region24: #{tpu_custom_call.1} parent=1 // pred_region
      %156 = dma.done [#allocation4], 512
    $region25: #{tpu_custom_call.1} parent=1 // pred_fallthru
      _
    %157 = vsyncpa [#allocation3], 1
    %158 = vsyncpa [#allocation4], 1

</llo_original>
